<compile_context>
chip_gen: v5e
topology: v5e:2x2
jax: 0.10.0
libtpu: 0.0.40
codegen_flags: <defaults>
</compile_context>

<pallas_src>
import functools

import jax
import jax.numpy as jnp
from jax import lax
from jax.experimental import pallas as pl
from jax.experimental.pallas import tpu as pltpu


def _gaussian_kernel(x_ref, w_ref, b_ref, out_ref,
                     *, num_outputs, mean_min, mean_max, std_epsilon):
    # Single fused matmul on the MXU: (TB, D) @ (D, 2*O) -> (TB, 2*O), f32 acc.
    z = jnp.dot(x_ref[...], w_ref[...],
                preferred_element_type=jnp.float32)
    z = z + b_ref[...].astype(jnp.float32)

    # Mean path (sigmoid + affine range remap), computed full lane width.
    sig = 1.0 / (1.0 + jnp.exp(-z))
    mean_full = sig * (mean_max - mean_min) + mean_min

    # Std path: numerically stable softplus + epsilon, full lane width.
    softplus = jnp.maximum(z, 0.0) + jnp.log1p(jnp.exp(-jnp.abs(z)))
    std_full = softplus + std_epsilon

    # First O lanes carry the mean branch, last O lanes the std branch.
    lane = lax.broadcasted_iota(jnp.int32, z.shape, dimension=1)
    out = jnp.where(lane < num_outputs, mean_full, std_full)
    out_ref[...] = out.astype(out_ref.dtype)


def gaussian_forward(x, w_mean, b_mean, w_std, b_std,
                     mean_range=(0.0, 1.0), std_epsilon=1e-3,
                     block_batch=256):
    """x: (B, D); w_*: (D, O); b_*: (1, O). Returns (mean, std), each (B, O)."""
    B, D = x.shape
    O = w_mean.shape[1]

    # Fuse the two heads into one operand each (done once, outside the kernel).
    w = jnp.concatenate([w_mean, w_std], axis=1)   # (D, 2*O)
    b = jnp.concatenate([b_mean, b_std], axis=1)   # (1, 2*O)

    # Batch tile: multiple of 8 (sublane) or the full batch if it is small.
    if B <= block_batch:
        tb = B
    else:
        tb = (block_batch // 8) * 8
    grid = (pl.cdiv(B, tb),)

    kernel = functools.partial(
        _gaussian_kernel,
        num_outputs=O,
        mean_min=float(mean_range[0]),
        mean_max=float(mean_range[1]),
        std_epsilon=float(std_epsilon),
    )

    out = pl.pallas_call(
        kernel,
        out_shape=jax.ShapeDtypeStruct((B, 2 * O), jnp.float32),
        grid_spec=pltpu.PrefetchScalarGridSpec(
            num_scalar_prefetch=0,
            grid=grid,
            in_specs=[
                pl.BlockSpec((tb, D), lambda i: (i, 0)),      # x tiles over batch
                pl.BlockSpec((D, 2 * O), lambda i: (0, 0)),   # fused weights, resident
                pl.BlockSpec((1, 2 * O), lambda i: (0, 0)),   # fused bias, resident
            ],
            out_specs=pl.BlockSpec((tb, 2 * O), lambda i: (i, 0)),
        ),
        compiler_params=pltpu.CompilerParams(
            dimension_semantics=("parallel",),
        ),
    )(x, w, b)

    # Split the lane-dense slab into the two heads in plain JAX.
    mean = out[:, :O]
    std = out[:, O:]
    return mean, std


def _orthogonal(key, shape):
    # Deterministic orthogonal init (matches nn.init.orthogonal_ semantics).
    return jax.nn.initializers.orthogonal()(key, shape, jnp.float32)


def _reference(x, w_mean, b_mean, w_std, b_std, mean_range, std_epsilon):
    zm = x @ w_mean + b_mean
    zs = x @ w_std + b_std
    mean = jax.nn.sigmoid(zm) * (mean_range[1] - mean_range[0]) + mean_range[0]
    std = jax.nn.softplus(zs) + std_epsilon
    return mean, std


if __name__ == "__main__":
    num_inputs = 32
    num_outputs = 1
    batch = 8

    key = jax.random.PRNGKey(0)
    kx, km, ks, kx2 = jax.random.split(key, 4)

    x = jax.random.normal(kx, (batch, num_inputs), dtype=jnp.float32)

    # fc_mean / fc_std: orthogonal weights, zero biases (as in init_)
    w_mean = _orthogonal(km, (num_inputs, num_outputs))
    b_mean = jnp.zeros((1, num_outputs), dtype=jnp.float32)
    w_std = _orthogonal(ks, (num_inputs, num_outputs))
    b_std = jnp.zeros((1, num_outputs), dtype=jnp.float32)

    mean, std = gaussian_forward(x, w_mean, b_mean, w_std, b_std,
                                 mean_range=(0.0, 1.0), std_epsilon=1e-3)
    jax.block_until_ready((mean, std))

    mean_ref, std_ref = _reference(x, w_mean, b_mean, w_std, b_std,
                                   (0.0, 1.0), 1e-3)
    assert mean.shape == (batch, num_outputs) and std.shape == (batch, num_outputs)
    assert jnp.allclose(mean, mean_ref, atol=1e-5), "mean mismatch"
    assert jnp.allclose(std, std_ref, atol=1e-5), "std mismatch"

    # Larger batch to exercise the tiled/parallel batch grid (grid > 1).
    big_batch = 512
    x_big = jax.random.normal(kx2, (big_batch, num_inputs), dtype=jnp.float32)
    mean_b, std_b = gaussian_forward(x_big, w_mean, b_mean, w_std, b_std,
                                     mean_range=(0.0, 1.0), std_epsilon=1e-3,
                                     block_batch=256)
    jax.block_until_ready((mean_b, std_b))
    mean_b_ref, std_b_ref = _reference(x_big, w_mean, b_mean, w_std, b_std,
                                       (0.0, 1.0), 1e-3)
    assert jnp.allclose(mean_b, mean_b_ref, atol=1e-5), "mean mismatch (big)"
    assert jnp.allclose(std_b, std_b_ref, atol=1e-5), "std mismatch (big)"

    print("KERNEL_OK")
</pallas_src>

<mosaic_0001>
module attributes {stable_mosaic.version = 11 : i64} {
  func.func @_gaussian_kernel(%arg0: i32, %arg1: memref<8x32xf32, #tpu.memory_space<vmem>>, %arg2: memref<32x2xf32, #tpu.memory_space<vmem>>, %arg3: memref<1x2xf32, #tpu.memory_space<vmem>>, %arg4: memref<8x2xf32, #tpu.memory_space<vmem>>) attributes {dimension_semantics = [#tpu.dimension_semantics<parallel>], iteration_bounds = array<i64: 1>, scalar_prefetch = 0 : i64, scratch_operands = 0 : i64, tpu.core_type = #tpu.core_type<tc>, window_params = [{transform_indices = @transform_0, window_bounds = array<i64: 8, 32>}, {pipeline_mode = #tpu.pipeline_mode<synchronous>, transform_indices = @transform_1, window_bounds = array<i64: 32, 2>}, {pipeline_mode = #tpu.pipeline_mode<synchronous>, transform_indices = @transform_2, window_bounds = array<i64: 1, 2>}, {transform_indices = @transform_3, window_bounds = array<i64: 8, 2>}]} {
    %c0 = arith.constant 0 : index
    %c0_0 = arith.constant 0 : index
    %0 = vector.load %arg1[%c0, %c0_0] : memref<8x32xf32, #tpu.memory_space<vmem>>, vector<8x32xf32>
    %c0_1 = arith.constant 0 : index
    %c0_2 = arith.constant 0 : index
    %1 = vector.load %arg2[%c0_1, %c0_2] : memref<32x2xf32, #tpu.memory_space<vmem>>, vector<32x2xf32>
    %cst = arith.constant dense<0.000000e+00> : vector<8x2xf32>
    %2 = tpu.matmul %0, %1, %cst {dimension_numbers = #tpu.dot_dimension_numbers<[1], [0], [0], [1], [0, 0, 1, 1], [], []>} : vector<8x32xf32>, vector<32x2xf32>, vector<8x2xf32> -> vector<8x2xf32>
    %c0_3 = arith.constant 0 : index
    %c0_4 = arith.constant 0 : index
    %3 = vector.load %arg3[%c0_3, %c0_4] : memref<1x2xf32, #tpu.memory_space<vmem>>, vector<1x2xf32>
    %4 = vector.broadcast %3 : vector<1x2xf32> to vector<8x2xf32>
    %5 = arith.addf %2, %4 : vector<8x2xf32>
    %cst_5 = arith.constant 0.000000e+00 : f32
    %6 = vector.broadcast %cst_5 : f32 to vector<8x2xf32>
    %7 = arith.subf %6, %5 : vector<8x2xf32>
    %8 = math.exp %7 : vector<8x2xf32>
    %cst_6 = arith.constant 1.000000e+00 : f32
    %9 = vector.broadcast %cst_6 : f32 to vector<8x2xf32>
    %10 = arith.addf %9, %8 : vector<8x2xf32>
    %cst_7 = arith.constant 1.000000e+00 : f32
    %11 = vector.broadcast %cst_7 : f32 to vector<8x2xf32>
    %12 = arith.divf %11, %10 : vector<8x2xf32>
    %cst_8 = arith.constant 1.000000e+00 : f32
    %13 = vector.broadcast %cst_8 : f32 to vector<8x2xf32>
    %14 = arith.mulf %12, %13 : vector<8x2xf32>
    %cst_9 = arith.constant 0.000000e+00 : f32
    %15 = vector.broadcast %cst_9 : f32 to vector<8x2xf32>
    %16 = arith.addf %14, %15 : vector<8x2xf32>
    %cst_10 = arith.constant 0.000000e+00 : f32
    %17 = vector.broadcast %cst_10 : f32 to vector<8x2xf32>
    %18 = arith.maximumf %5, %17 : vector<8x2xf32>
    %19 = math.absf %5 : vector<8x2xf32>
    %cst_11 = arith.constant 0.000000e+00 : f32
    %20 = vector.broadcast %cst_11 : f32 to vector<8x2xf32>
    %21 = arith.subf %20, %19 : vector<8x2xf32>
    %22 = math.exp %21 : vector<8x2xf32>
    %23 = math.log1p %22 : vector<8x2xf32>
    %24 = arith.addf %18, %23 : vector<8x2xf32>
    %cst_12 = arith.constant 1.000000e-03 : f32
    %25 = vector.broadcast %cst_12 : f32 to vector<8x2xf32>
    %26 = arith.addf %24, %25 : vector<8x2xf32>
    %27 = tpu.iota {dimensions = array<i32: 1>} : vector<8x2xi32>
    %c1_i32 = arith.constant 1 : i32
    %28 = vector.broadcast %c1_i32 : i32 to vector<8x2xi32>
    %29 = arith.cmpi slt, %27, %28 : vector<8x2xi32>
    %30 = arith.select %29, %16, %26 : vector<8x2xi1>, vector<8x2xf32>
    %c0_13 = arith.constant 0 : index
    %c0_14 = arith.constant 0 : index
    %31 = vector.load %arg4[%c0_13, %c0_14] : memref<8x2xf32, #tpu.memory_space<vmem>>, vector<8x2xf32>
    tpu.vector_store %arg4[%c0_13, %c0_14], %30 {strides = array<i32>} : memref<8x2xf32, #tpu.memory_space<vmem>>, vector<8x2xf32>,
    return
  }
  func.func @transform_0(%arg0: i32) -> (i32, i32) {
    %c0_i32 = arith.constant 0 : i32
    %c0_i32_0 = arith.constant 0 : i32
    return %arg0, %c0_i32 : i32, i32
  }
  func.func @transform_1(%arg0: i32) -> (i32, i32) {
    %c0_i32 = arith.constant 0 : i32
    %c0_i32_0 = arith.constant 0 : i32
    %c0_i32_1 = arith.constant 0 : i32
    return %c0_i32, %c0_i32_0 : i32, i32
  }
  func.func @transform_2(%arg0: i32) -> (i32, i32) {
    %c0_i32 = arith.constant 0 : i32
    %c0_i32_0 = arith.constant 0 : i32
    %c0_i32_1 = arith.constant 0 : i32
    return %c0_i32, %c0_i32_0 : i32, i32
  }
  func.func @transform_3(%arg0: i32) -> (i32, i32) {
    %c0_i32 = arith.constant 0 : i32
    %c0_i32_0 = arith.constant 0 : i32
    return %arg0, %c0_i32 : i32, i32
  }
}

</mosaic_0001>

<llo_original>
// kernel: tpu_custom_call.1
$region0: #{tpu_custom_call.1}
  #allocation0 [shape = 'u32[]', space=smem, size = 0x4, offset = 0x4, fixed_abs, tag = 'smem constant byte address 0x4 - core index']
  #allocation1 [shape = 'u32[72,128]{1,0:T(1,128)}', space=vmem, size = 0x9000, scoped, tag = 'internal scratch']
  %s0 = inlined_call_operand.vmem [shape: f32[8,32], index: 0, kind: input, shape index: {}]
  %s1 = inlined_call_operand.vmem [shape: f32[32,2], index: 1, kind: input, shape index: {}]
  %s2 = inlined_call_operand.vmem [shape: f32[1,2], index: 2, kind: input, shape index: {}]
  %s3 = inlined_call_operand.vmem [shape: f32[8,2], index: 3, kind: output, shape index: {}]
  %s4 = sld [smem:[#allocation0]]
  $region22: #{tpu_custom_call.1} parent=0
    _
  %s6 = ssub.s32 1, %s4
  %s7 = scalar_select 0, %s6, %s4
  // Predicated region
  $region2: #{tpu_custom_call.1} parent=0 // pred_check
    _
  $region3: #{tpu_custom_call.1} parent=0 // pred_check_branch
    %9 = sbr.rel (0) target = $region5
  $region4: #{tpu_custom_call.1} parent=0 // pred_region
    _
  $region5: #{tpu_custom_call.1} parent=0 // pred_fallthru
    _
  // Predicated region
  $region6: #{tpu_custom_call.1} parent=0 // pred_check
    _
  $region7: #{tpu_custom_call.1} parent=0 // pred_check_branch
    %11 = sbr.rel (0) target = $region9
  $region8: #{tpu_custom_call.1} parent=0 // pred_region
    _
  $region9: #{tpu_custom_call.1} parent=0 // pred_fallthru
    _
  // Predicated region
  $region10: #{tpu_custom_call.1} parent=0 // pred_check
    _
  $region11: #{tpu_custom_call.1} parent=0 // pred_check_branch
    %13 = sbr.rel (0) target = $region13
  $region12: #{tpu_custom_call.1} parent=0 // pred_region
    _
  $region13: #{tpu_custom_call.1} parent=0 // pred_fallthru
    _
  %v14 = vld [vmem:[%s0] sm:$0xff]
  %v15 = vld [vmem:[%s1] sm:$0xff]
  %v16 = vld [vmem:[%s1 + $0x8] sm:$0xff]
  %v17 = vld [vmem:[%s1 + $0x10] sm:$0xff]
  %v18 = vld [vmem:[%s1 + $0x18] sm:$0xff]
  %v19 = vld [vmem:[%s2] sm:$0x1]
  %v21 = vperm.slane %v19, 0
  %vm23 = vcmask 261120
  %v25 = vsel %vm23, %v14, 0
  %27 = vmatpush.msra.mxu0 0.0
  %28 = vmatpush.msra.mxu0 0.0
  %29 = vmatpush.msra.mxu0 0.0
  %30 = vmatpush.msra.mxu0 0.0
  %31 = vmatpush.msra.mxu0 0.0
  %32 = vmatpush.msra.mxu0 0.0
  %33 = vmatpush.msra.mxu0 0.0
  %34 = vmatpush.msra.mxu0 0.0
  %35 = vmatpush.msra.mxu0 0.0
  %36 = vmatpush.msra.mxu0 0.0
  %37 = vmatpush.msra.mxu0 0.0
  %38 = vmatpush.msra.mxu0 0.0
  %39 = vmatpush.msra.mxu0 %v18
  %40 = vmatpush.msra.mxu0 %v17
  %41 = vmatpush.msra.mxu0 %v16
  %42 = vmatpush.msra.mxu0 %v15
  %43 = vmatmul.f32.gmra.mxu0 %v25
  %v44 = vpop.f32.mrf.mxu0
  %v45 = vadd.f32 %v21, %v44
  %46 = vdwg.mxu0
  %v47 = vsub.f32 0.0, %v45
  %v48 = vmul.f32 %v47, 1.442695
  %v49 = vpow.pop %v48
  %v50 = vadd.f32 %v49, 1.0
  %v51 = vrcp.pop %v50
  %v52 = vmul.f32 %v50, %v51
  %v53 = vsub.f32 1.0, %v52
  %v54 = vmul.f32 %v51, %v53
  %v55 = vadd.f32 %v51, %v54
  %vm56 = vweird.f32 %v50
  %vm57 = vweird.f32 %v51
  %vm58 = vmor %vm56, %vm57
  %v59 = vsel %vm58, %v51, %v55
  %v60 = vand.u32 2147483647, %v50
  %vm61 = vcmp.eq.f32.partialorder %v60, 8.507059e+37
  %v62 = vand.u32 %v50, 2147483648
  %v63 = vor.u32 1.1754944e-38, %v62
  %v64 = vsel %vm61, %v63, %v59
  %v65 = vmul.f32 1.0, %v64
  %v66 = vadd.f32 %v65, 0.0
  %v67 = vmax.f32 %v45, 0.0
  %v68 = vand.u32 2147483647, %v45
  %v69 = vsub.f32 0.0, %v68
  %v70 = vmul.f32 %v69, 1.442695
  %v71 = vpow.pop %v70
  %v72 = vadd.f32 %v71, 1.0
  %v73 = vlog2.pop %v72
  %v74 = vmul.f32 %v73, 0.6931472
  %v75 = vmul.f32 -0.5, %v71
  %v76 = vadd.f32 %v75, 1.0
  %v77 = vmul.f32 %v76, %v71
  %v78 = vand.u32 2147483647, %v71
  %vm79 = vcmp.lt.f32.partialorder %v78, 0.0004427343
  %v80 = vsel %vm79, %v77, %v74
  %v81 = vadd.f32 %v67, %v80
  %v82 = vadd.f32 %v81, 0.001
  %v83 = vlaneseq
  %v84 = vand.u32 %v83, 127
  %vm85 = vcmp.lt.s32.totalorder %v84, 1
  %v86 = vsel %vm85, %v66, %v82
  %vm87 = vcmask 15360
  %88 = vst.msk [vmem:[%s3] sm:$0xff] %vm87, %v86
  // Predicated region
  $region14: #{tpu_custom_call.1} parent=0 // pred_check
    _
  $region15: #{tpu_custom_call.1} parent=0 // pred_check_branch
    %90 = sbr.rel (0) target = $region17
  $region16: #{tpu_custom_call.1} parent=0 // pred_region
    _
  $region17: #{tpu_custom_call.1} parent=0 // pred_fallthru
    _
  // Predicated region
  $region18: #{tpu_custom_call.1} parent=0 // pred_check
    _
  $region19: #{tpu_custom_call.1} parent=0 // pred_check_branch
    %92 = sbr.rel (0) target = $region21
  $region20: #{tpu_custom_call.1} parent=0 // pred_region
    _
  $region21: #{tpu_custom_call.1} parent=0 // pred_fallthru
    _

</llo_original>
